<compile_context>
chip_gen: v7x
topology: tpu7x:2x2x1
jax: 0.10.0
libtpu: 0.0.40
codegen_flags: <defaults>
</compile_context>

<pallas_src>
import functools

import jax
import jax.numpy as jnp
from jax import lax
from jax.experimental import pallas as pl
from jax.experimental.pallas import tpu as pltpu

_LANE = 128
_SUBLANE = 8


def _round_up(v, m):
    return ((v + m - 1) // m) * m


def _pick_vmem_limit():
    # ~75% of physical VMEM: ~96 MiB on v5e/v6e (128 MiB), ~48 MiB on v7x (64 MiB).
    try:
        phys = int(pltpu.get_tpu_info().vmem_capacity_bytes)
    except Exception:
        phys = 64 * 1024 * 1024
    return min(phys * 3 // 4, 100 * 1024 * 1024)


def _masked_linear_ce_kernel(x_ref, lbl_ref, wm_ref, b_ref, o_ref, acc_ref,
                             *, matmul_dtype):
    """One grid step = one tile of flattened query rows (all tasks merged)."""
    r = pl.program_id(1)                       # reduction axis (row tiles)

    @pl.when(r == 0)
    def _init():
        acc_ref[...] = jnp.zeros_like(acc_ref)

    # masked-linear forward: in-kernel cast hides under DMA, f32 MXU accumulate
    x = x_ref[...].astype(matmul_dtype)                        # [TR, D]
    logits = jnp.dot(x, wm_ref[...],
                     preferred_element_type=jnp.float32) + b_ref[...]

    # stable softmax cross-entropy; all CE math pinned to f32
    row_max = jnp.max(logits, axis=-1, keepdims=True)
    z = logits - row_max                                       # [TR, C]
    lse = jnp.log(jnp.sum(jnp.exp(z), axis=-1, keepdims=True))  # [TR, 1]

    # int-label gather via lane iota; padded rows carry label -1 -> no match
    labels = lbl_ref[...]                                      # [TR, 1] int32
    cols = lax.broadcasted_iota(jnp.int32, z.shape, 1)         # [TR, C]
    picked = jnp.sum(jnp.where(cols == labels, z, 0.0),
                     axis=-1, keepdims=True)                   # [TR, 1]
    valid = (labels >= 0).astype(jnp.float32)                  # 0 for pad rows

    # elementwise accumulate; full cross-lane reduce deferred to finalize
    acc_ref[...] += valid * (lse - picked)

    @pl.when(r == pl.num_programs(1) - 1)
    def _finalize():
        # lane-dense (1,128) partial-sum block for this core's grid share
        o_ref[...] = jnp.zeros_like(o_ref) + jnp.sum(acc_ref[...])


def maml_outer_loss(x, y, w, mask, bias, lc, *,
                    matmul_dtype=jnp.bfloat16, row_tile=512, num_cores=2):
    """x: [T, N, D] query activations, y: [T, N] int class labels,
    w/mask: [D, C], bias: [C] or [1, C].  Returns the scalar outer loss."""
    T, N, D = x.shape
    C = w.shape[-1]
    # (1/T)*sum_t mean_N == mean over T*N rows; valid because every task has
    # the identical query count N (guaranteed by the [T, N, D] array shape).
    R = T * N

    # Parameters: precompute masked weight + L2 regulariser in the wrapper
    # (single tiny DxC passes); stream only wm (matmul dtype) and bias.
    w = w.astype(jnp.float32)
    mask = mask.astype(jnp.float32)
    wm = (w * mask).astype(matmul_dtype)                       # [D, C]
    reg = 0.5 * jnp.sum(mask * mask)                           # exact f32
    b = bias.astype(jnp.float32).reshape(1, C)

    # Row tiling: sublane-aligned tile, optional multi-core split (v7x).
    TR = max(_SUBLANE, min(_round_up(row_tile, _SUBLANE),
                           _round_up(R, _SUBLANE)))
    P = max(1, min(num_cores, pl.cdiv(R, TR)))                 # parallel cores
    Gp = pl.cdiv(R, TR * P)                                    # row tiles/core
    Rp = Gp * TR * P

    # x streams in its native dtype (cast in-kernel); rows are padded only if
    # R is not already tile*core aligned.  Padded rows get label -1.
    x2 = x.reshape(R, D)
    lbl = y.reshape(R, 1).astype(jnp.int32)
    if Rp != R:
        x2 = jnp.pad(x2, ((0, Rp - R), (0, 0)))
        lbl = jnp.pad(lbl, ((0, Rp - R), (0, 0)), constant_values=-1)

    kernel = functools.partial(_masked_linear_ce_kernel,
                               matmul_dtype=matmul_dtype)
    out = pl.pallas_call(
        kernel,
        out_shape=jax.ShapeDtypeStruct((1, P * _LANE), jnp.float32),
        grid_spec=pltpu.PrefetchScalarGridSpec(
            num_scalar_prefetch=0,
            grid=(P, Gp),
            in_specs=[
                pl.BlockSpec((TR, D), lambda p, r: (p * Gp + r, 0)),  # x rows
                pl.BlockSpec((TR, 1), lambda p, r: (p * Gp + r, 0)),  # labels
                pl.BlockSpec((D, C), lambda p, r: (0, 0)),            # W * M
                pl.BlockSpec((1, C), lambda p, r: (0, 0)),            # bias
            ],
            out_specs=pl.BlockSpec((1, _LANE), lambda p, r: (0, p)),
            scratch_shapes=[pltpu.VMEM((TR, 1), jnp.float32)],         # nll acc
        ),
        compiler_params=pltpu.CompilerParams(
            dimension_semantics=("parallel", "arbitrary"),
            vmem_limit_bytes=_pick_vmem_limit(),
        ),
    )(x2, lbl, wm, b)

    partials = out.reshape(P, _LANE)[:, 0]                     # per-core sums
    return jnp.sum(partials) / float(R) + lc * reg


def _reference_loss(x, y, w, mask, bias, lc):
    T = x.shape[0]
    wm = w * mask
    total = 0.0
    for t in range(T):
        logits = x[t] @ wm + bias.reshape(1, -1)
        z = logits - jnp.max(logits, axis=-1, keepdims=True)
        lse = jnp.log(jnp.sum(jnp.exp(z), axis=-1))
        picked = jnp.take_along_axis(z, y[t][:, None], axis=-1)[:, 0]
        total = total + jnp.mean(lse - picked)
    return total / T + lc * jnp.sum(mask * mask) / 2.0


if __name__ == "__main__":
    key = jax.random.PRNGKey(0)

    def run_case(T, N, D, C, lc, row_tile):
        kx, ky, kw, km, kb = jax.random.split(
            jax.random.fold_in(key, T * 1000 + N), 5)
        x = jax.random.normal(kx, (T, N, D), dtype=jnp.float32)
        y = jax.random.randint(ky, (T, N), 0, C)
        w = jax.random.normal(kw, (D, C), dtype=jnp.float32) * 0.1
        mask = jax.random.uniform(km, (D, C), dtype=jnp.float32)
        bias = jax.random.normal(kb, (1, C), dtype=jnp.float32) * 0.01

        ref = _reference_loss(x, y, w, mask, bias, lc)

        # exact path: f32 MXU inputs, tight tolerance
        loss_f32 = jax.block_until_ready(
            maml_outer_loss(x, y, w, mask, bias, lc,
                            matmul_dtype=jnp.float32, row_tile=row_tile))
        assert jnp.allclose(loss_f32, ref, atol=5e-4, rtol=5e-4), (loss_f32, ref)

        # fast path: bf16 MXU inputs, f32 accumulation / CE math
        loss_bf16 = jax.block_until_ready(
            maml_outer_loss(x, y, w, mask, bias, lc,
                            matmul_dtype=jnp.bfloat16, row_tile=row_tile))
        assert jnp.allclose(loss_bf16, ref, atol=5e-2, rtol=5e-2), (loss_bf16, ref)

    # small meta-batch: single row tile, single core share
    run_case(T=2, N=8, D=32, C=16, lc=0.01, row_tile=512)
    # larger meta-batch: exercises the 2-way parallel axis, a multi-step
    # reduction axis, and ragged row padding (R=300 -> Rp=384, label=-1 rows)
    run_case(T=3, N=100, D=32, C=16, lc=0.01, row_tile=64)

    print("KERNEL_OK")
</pallas_src>

<mosaic_0001>
module attributes {stable_mosaic.version = 11 : i64} {
  func.func @_masked_linear_ce_kernel(%arg0: i32, %arg1: i32, %arg2: memref<16x32xf32, #tpu.memory_space<vmem>>, %arg3: memref<16x1xi32, #tpu.memory_space<vmem>>, %arg4: memref<32x16xf32, #tpu.memory_space<vmem>>, %arg5: memref<1x16xf32, #tpu.memory_space<vmem>>, %arg6: memref<1x128xf32, #tpu.memory_space<vmem>>, %arg7: memref<16x1xf32, #tpu.memory_space<vmem>>) attributes {dimension_semantics = [#tpu.dimension_semantics<parallel>, #tpu.dimension_semantics<arbitrary>], iteration_bounds = array<i64: 1, 1>, scalar_prefetch = 0 : i64, scratch_operands = 1 : i64, tpu.core_type = #tpu.core_type<tc>, window_params = [{transform_indices = @transform_0, window_bounds = array<i64: 16, 32>}, {transform_indices = @transform_1, window_bounds = array<i64: 16, 1>}, {pipeline_mode = #tpu.pipeline_mode<synchronous>, transform_indices = @transform_2, window_bounds = array<i64: 32, 16>}, {pipeline_mode = #tpu.pipeline_mode<synchronous>, transform_indices = @transform_3, window_bounds = array<i64: 1, 16>}, {transform_indices = @transform_4, window_bounds = array<i64: 1, 128>}]} {
    %c0_i32 = arith.constant 0 : i32
    %0 = arith.cmpi eq, %arg1, %c0_i32 : i32
    %1 = arith.extui %0 : i1 to i32
    %c0_i32_0 = arith.constant 0 : i32
    %2 = arith.cmpi ne, %1, %c0_i32_0 : i32
    scf.if %2 {
      %cst_19 = arith.constant 0.000000e+00 : f32
      %37 = vector.broadcast %cst_19 : f32 to vector<16x1xf32>
      %c0_20 = arith.constant 0 : index
      %c0_21 = arith.constant 0 : index
      %38 = vector.load %arg7[%c0_20, %c0_21] : memref<16x1xf32, #tpu.memory_space<vmem>>, vector<16x1xf32>
      tpu.vector_store %arg7[%c0_20, %c0_21], %37 {strides = array<i32>} : memref<16x1xf32, #tpu.memory_space<vmem>>, vector<16x1xf32>,
    } else {
    }
    %c0 = arith.constant 0 : index
    %c0_1 = arith.constant 0 : index
    %3 = vector.load %arg2[%c0, %c0_1] : memref<16x32xf32, #tpu.memory_space<vmem>>, vector<16x32xf32>
    %c0_2 = arith.constant 0 : index
    %c0_3 = arith.constant 0 : index
    %4 = vector.load %arg4[%c0_2, %c0_3] : memref<32x16xf32, #tpu.memory_space<vmem>>, vector<32x16xf32>
    %cst = arith.constant dense<0.000000e+00> : vector<16x16xf32>
    %5 = tpu.matmul %3, %4, %cst {dimension_numbers = #tpu.dot_dimension_numbers<[1], [0], [0], [1], [0, 0, 1, 1], [], []>} : vector<16x32xf32>, vector<32x16xf32>, vector<16x16xf32> -> vector<16x16xf32>
    %c0_4 = arith.constant 0 : index
    %c0_5 = arith.constant 0 : index
    %6 = vector.load %arg5[%c0_4, %c0_5] : memref<1x16xf32, #tpu.memory_space<vmem>>, vector<1x16xf32>
    %7 = vector.broadcast %6 : vector<1x16xf32> to vector<16x16xf32>
    %8 = arith.addf %5, %7 : vector<16x16xf32>
    %cst_6 = arith.constant dense<0xFF800000> : vector<16xf32>
    %9 = vector.multi_reduction <maximumf>, %8, %cst_6 [1] : vector<16x16xf32> to vector<16xf32>
    %10 = vector.shape_cast %9 : vector<16xf32> to vector<16x1xf32>
    %11 = vector.broadcast %10 : vector<16x1xf32> to vector<16x16xf32>
    %12 = arith.subf %8, %11 : vector<16x16xf32>
    %13 = math.exp %12 : vector<16x16xf32>
    %cst_7 = arith.constant dense<0.000000e+00> : vector<16xf32>
    %14 = vector.multi_reduction <add>, %13, %cst_7 [1] : vector<16x16xf32> to vector<16xf32>
    %15 = vector.shape_cast %14 : vector<16xf32> to vector<16x1xf32>
    %16 = math.log %15 : vector<16x1xf32>
    %c0_8 = arith.constant 0 : index
    %c0_9 = arith.constant 0 : index
    %17 = vector.load %arg3[%c0_8, %c0_9] : memref<16x1xi32, #tpu.memory_space<vmem>>, vector<16x1xi32>
    %18 = tpu.iota {dimensions = array<i32: 1>} : vector<16x16xi32>
    %19 = vector.broadcast %17 : vector<16x1xi32> to vector<16x16xi32>
    %20 = arith.cmpi eq, %18, %19 : vector<16x16xi32>
    %cst_10 = arith.constant 0.000000e+00 : f32
    %21 = vector.broadcast %cst_10 : f32 to vector<16x16xf32>
    %22 = arith.select %20, %12, %21 : vector<16x16xi1>, vector<16x16xf32>
    %cst_11 = arith.constant dense<0.000000e+00> : vector<16xf32>
    %23 = vector.multi_reduction <add>, %22, %cst_11 [1] : vector<16x16xf32> to vector<16xf32>
    %24 = vector.shape_cast %23 : vector<16xf32> to vector<16x1xf32>
    %c0_i32_12 = arith.constant 0 : i32
    %25 = vector.broadcast %c0_i32_12 : i32 to vector<16x1xi32>
    %26 = arith.cmpi sge, %17, %25 : vector<16x1xi32>
    %27 = arith.extui %26 : vector<16x1xi1> to vector<16x1xi32>
    %28 = arith.sitofp %27 : vector<16x1xi32> to vector<16x1xf32>
    %c0_13 = arith.constant 0 : index
    %c0_14 = arith.constant 0 : index
    %29 = vector.load %arg7[%c0_13, %c0_14] : memref<16x1xf32, #tpu.memory_space<vmem>>, vector<16x1xf32>
    %30 = arith.subf %16, %24 : vector<16x1xf32>
    %31 = arith.mulf %28, %30 : vector<16x1xf32>
    %32 = arith.addf %29, %31 : vector<16x1xf32>
    %c0_15 = arith.constant 0 : index
    %c0_16 = arith.constant 0 : index
    %33 = vector.load %arg7[%c0_15, %c0_16] : memref<16x1xf32, #tpu.memory_space<vmem>>, vector<16x1xf32>
    tpu.vector_store %arg7[%c0_15, %c0_16], %32 {strides = array<i32>} : memref<16x1xf32, #tpu.memory_space<vmem>>, vector<16x1xf32>,
    %c0_i32_17 = arith.constant 0 : i32
    %34 = arith.cmpi eq, %arg1, %c0_i32_17 : i32
    %35 = arith.extui %34 : i1 to i32
    %c0_i32_18 = arith.constant 0 : i32
    %36 = arith.cmpi ne, %35, %c0_i32_18 : i32
    scf.if %36 {
      %cst_19 = arith.constant 0.000000e+00 : f32
      %37 = vector.broadcast %cst_19 : f32 to vector<1x128xf32>
      %c0_20 = arith.constant 0 : index
      %c0_21 = arith.constant 0 : index
      %38 = vector.load %arg7[%c0_20, %c0_21] : memref<16x1xf32, #tpu.memory_space<vmem>>, vector<16x1xf32>
      %39 = vector.shape_cast %38 : vector<16x1xf32> to vector<1x16x1xf32>
      %cst_22 = arith.constant dense<0.000000e+00> : vector<1xf32>
      %40 = vector.multi_reduction <add>, %39, %cst_22 [1, 2] : vector<1x16x1xf32> to vector<1xf32>
      %41 = vector.shape_cast %40 : vector<1xf32> to vector<1x1x1xf32>
      %42 = vector.extract %41[0, 0, 0] : f32 from vector<1x1x1xf32>
      %43 = vector.broadcast %42 : f32 to vector<1x128xf32>
      %44 = arith.addf %37, %43 : vector<1x128xf32>
      %c0_23 = arith.constant 0 : index
      %c0_24 = arith.constant 0 : index
      %45 = vector.load %arg6[%c0_23, %c0_24] : memref<1x128xf32, #tpu.memory_space<vmem>>, vector<1x128xf32>
      tpu.vector_store %arg6[%c0_23, %c0_24], %44 {strides = array<i32>} : memref<1x128xf32, #tpu.memory_space<vmem>>, vector<1x128xf32>,
    } else {
    }
    return
  }
  func.func @transform_0(%arg0: i32, %arg1: i32) -> (i32, i32) {
    %c1_i32 = arith.constant 1 : i32
    %0 = arith.muli %arg0, %c1_i32 : i32
    %1 = arith.addi %0, %arg1 : i32
    %c0_i32 = arith.constant 0 : i32
    %c0_i32_0 = arith.constant 0 : i32
    return %1, %c0_i32 : i32, i32
  }
  func.func @transform_1(%arg0: i32, %arg1: i32) -> (i32, i32) {
    %c1_i32 = arith.constant 1 : i32
    %0 = arith.muli %arg0, %c1_i32 : i32
    %1 = arith.addi %0, %arg1 : i32
    %c0_i32 = arith.constant 0 : i32
    %c0_i32_0 = arith.constant 0 : i32
    return %1, %c0_i32 : i32, i32
  }
  func.func @transform_2(%arg0: i32, %arg1: i32) -> (i32, i32) {
    %c0_i32 = arith.constant 0 : i32
    %c0_i32_0 = arith.constant 0 : i32
    %c0_i32_1 = arith.constant 0 : i32
    return %c0_i32, %c0_i32_0 : i32, i32
  }
  func.func @transform_3(%arg0: i32, %arg1: i32) -> (i32, i32) {
    %c0_i32 = arith.constant 0 : i32
    %c0_i32_0 = arith.constant 0 : i32
    %c0_i32_1 = arith.constant 0 : i32
    return %c0_i32, %c0_i32_0 : i32, i32
  }
  func.func @transform_4(%arg0: i32, %arg1: i32) -> (i32, i32) {
    %c0_i32 = arith.constant 0 : i32
    %c0_i32_0 = arith.constant 0 : i32
    return %c0_i32, %arg0 : i32, i32
  }
}

</mosaic_0001>

<llo_original>
// kernel: tpu_custom_call.1
$region0: #{tpu_custom_call.1}
  #allocation0 [shape = 'u32[]', space=smem, size = 0x4, offset = 0x4, fixed_abs, tag = 'smem constant byte address 0x4 - core index']
  #allocation1 [shape = 'u32[144,128]{1,0:T(1,128)}', space=vmem, size = 0x12000, scoped, tag = 'internal scratch']
  #allocation2 [shape = 'f32[16,1]{1,0:T(8,128)}', space=vmem, size = 0x2000, scoped, tag = 'scratch operand']
  %s0 = inlined_call_operand.vmem [shape: f32[16,32], index: 0, kind: input, shape index: {}]
  %s1 = inlined_call_operand.vmem [shape: s32[16,1], index: 1, kind: input, shape index: {}]
  %s2 = inlined_call_operand.vmem [shape: f32[32,16], index: 2, kind: input, shape index: {}]
  %s3 = inlined_call_operand.vmem [shape: f32[1,16], index: 3, kind: input, shape index: {}]
  %s4 = inlined_call_operand.hbm [shape: f32[1,128], index: 4, kind: output, shape index: {}]
  %s5 = sld [smem:[#allocation0]]
  $region34: #{tpu_custom_call.1} parent=0
    _
  %s7 = ssub.s32 1, %s5
  %s8 = scalar_select 0, %s7, %s5
  $region1: #{tpu_custom_call.1} parent=0
    #allocation3 [shape = 'u8[512]{0}', space=vmem, size = 0x400, scoped, tag = 'output window, operand 0, single buffered']
    #allocation4 [shape = 's32[1]{0}', space=sflag, size = 0x4, scoped, tag = 'scoped memory for tpu_custom_call.1']
    %9 = vsyncpa [#allocation4], 0
    // Predicated region
    $region2: #{tpu_custom_call.1} parent=1 // pred_check
      _
    $region3: #{tpu_custom_call.1} parent=1 // pred_check_branch
      %11 = sbr.rel (0) target = $region5
    $region4: #{tpu_custom_call.1} parent=1 // pred_region
      %s12 = sadd.s32 0, 0
      %s13 = smul.u32 2, %s12
      %p14 = scmp.lt.s32.totalorder %s13, 1
      %s15 = scalar_select %p14, %s13, 1
      %s16 = smul.addr %s15, 8
      %s17 = scalar_lea.vmem %s0, %s16
      %s18 = sadd.s32 0, 0
      %s19 = smul.u32 2, %s18
    $region5: #{tpu_custom_call.1} parent=1 // pred_fallthru
      _
    // Predicated region
    $region6: #{tpu_custom_call.1} parent=1 // pred_check
      _
    $region7: #{tpu_custom_call.1} parent=1 // pred_check_branch
      %21 = sbr.rel (0) target = $region9
    $region8: #{tpu_custom_call.1} parent=1 // pred_region
      %s22 = sadd.s32 0, 0
      %s23 = smul.u32 2, %s22
      %p24 = scmp.lt.s32.totalorder %s23, 1
      %s25 = scalar_select %p24, %s23, 1
      %s26 = smul.addr %s25, 8
      %s27 = scalar_lea.vmem %s1, %s26
      %s28 = sadd.s32 0, 0
      %s29 = smul.u32 2, %s28
    $region9: #{tpu_custom_call.1} parent=1 // pred_fallthru
      _
    // Predicated region
    $region10: #{tpu_custom_call.1} parent=1 // pred_check
      _
    $region11: #{tpu_custom_call.1} parent=1 // pred_check_branch
      %31 = sbr.rel (0) target = $region13
    $region12: #{tpu_custom_call.1} parent=1 // pred_region
      _
    $region13: #{tpu_custom_call.1} parent=1 // pred_fallthru
      _
    // Predicated region
    $region14: #{tpu_custom_call.1} parent=1 // pred_check
      _
    $region15: #{tpu_custom_call.1} parent=1 // pred_check_branch
      %33 = sbr.rel (0) target = $region17
    $region16: #{tpu_custom_call.1} parent=1 // pred_region
      _
    $region17: #{tpu_custom_call.1} parent=1 // pred_fallthru
      _
    %s34 = sadd.s32 0, 0
    %s35 = smul.u32 2, %s34
    %p36 = scmp.lt.s32.totalorder %s35, 1
    %s37 = scalar_select %p36, %s35, 1
    %s38 = smul.addr %s37, 8
    %s39 = scalar_lea.vmem %s0, %s38
    %s40 = sadd.s32 0, 0
    %s41 = smul.u32 2, %s40
    %p42 = scmp.lt.s32.totalorder %s41, 1
    %s43 = scalar_select %p42, %s41, 1
    %s44 = smul.addr %s43, 8
    %s45 = scalar_lea.vmem %s1, %s44
    %s46 = sadd.s32 0, 0
    %s47 = smul.u32 2, %s46
    %p48 = scmp.lt.s32.totalorder %s47, 1
    %s49 = scalar_select %p48, %s47, 1
    %s50 = smul.addr %s49, 8
    %s51 = scalar_lea.vmem %s0, %s50
    %s52 = sadd.s32 0, 0
    %s53 = smul.u32 2, %s52
    %s54 = sadd.s32 0, 0
    %s55 = smul.u32 2, %s54
    %p56 = scmp.lt.s32.totalorder %s55, 1
    %s57 = scalar_select %p56, %s55, 1
    %s58 = smul.addr %s57, 8
    %s59 = scalar_lea.vmem %s1, %s58
    %s60 = sadd.s32 0, 0
    %s61 = smul.u32 2, %s60
    %p62 = scmp.eq.s32.totalorder 0, 0
    // Predicated region
    $region18: #{tpu_custom_call.1} parent=1 // pred_check
      %p63 = pneg %p62
    $region19: #{tpu_custom_call.1} parent=1 // pred_check_branch
      %65 = sbr.rel (%p63) target = $region21
    $region20: #{tpu_custom_call.1} parent=1 // pred_region
      %vm66 = vcmask 7168
      %67 = vst.msk [vmem:[#allocation2] sm:$0xff] %vm66, 0.0
      %68 = vst.msk [vmem:[#allocation2 + $0x8] sm:$0xff] %vm66, 0.0
    $region21: #{tpu_custom_call.1} parent=1 // pred_fallthru
      _
    %v69 = vld [vmem:[%s51] sm:$0xff]
    %v70 = vld [vmem:[%s51 + $0x8] sm:$0xff]
    %v71 = vld [vmem:[%s2] sm:$0xff]
    %v72 = vld [vmem:[%s2 + $0x8] sm:$0xff]
    %v73 = vld [vmem:[%s2 + $0x10] sm:$0xff]
    %v74 = vld [vmem:[%s2 + $0x18] sm:$0xff]
    %v75 = vld [vmem:[%s3] sm:$0x1]
    %v77 = vlaneseq
    %v78 = vshrl.u32 %v77, 7
    %v79 = vsub.s32 0, %v78
    %v80 = vrot.slane %v75, %v79
    %vm82 = vcmask 261120
    %v84 = vsel %vm82, %v69, 0
    %v87 = vsel %vm82, %v70, 0
    %89 = vmatprep.subr.mxu0 0.0
    %90 = vmatpush1.msra.mxu0 %v71
    %91 = vmatprep.subr.mxu0 0.0
    %92 = vmatpush1.msra.mxu0 %v72
    %93 = vmatprep.subr.mxu0 0.0
    %94 = vmatpush1.msra.mxu0 %v73
    %95 = vmatprep.subr.mxu0 0.0
    %96 = vmatpush1.msra.mxu0 %v74
    %97 = vmatprep.subr.mxu0 0.0
    %98 = vmatpush1.msra.mxu0 0.0
    %99 = vmatprep.subr.mxu0 0.0
    %100 = vmatpush1.msra.mxu0 0.0
    %101 = vmatprep.subr.mxu0 0.0
    %102 = vmatpush1.msra.mxu0 0.0
    %103 = vmatprep.subr.mxu0 0.0
    %104 = vmatpush1.msra.mxu0 0.0
    %105 = vmatprep.subr.mxu0 0.0
    %106 = vmatpush1.msra.mxu0 0.0
    %107 = vmatprep.subr.mxu0 0.0
    %108 = vmatpush1.msra.mxu0 0.0
    %109 = vmatprep.subr.mxu0 0.0
    %110 = vmatpush1.msra.mxu0 0.0
    %111 = vmatprep.subr.mxu0 0.0
    %112 = vmatpush1.msra.mxu0 0.0
    %113 = vmatprep.subr.mxu0 0.0
    %114 = vmatpush1.msra.mxu0 0.0
    %115 = vmatprep.subr.mxu0 0.0
    %116 = vmatpush1.msra.mxu0 0.0
    %117 = vmatprep.subr.mxu0 0.0
    %118 = vmatpush1.msra.mxu0 0.0
    %119 = vmatprep.subr.mxu0 0.0
    %120 = vmatpush1.msra.mxu0 0.0
    %121 = vmatprep.subr.mxu0 0.0
    %122 = vmatpush1.msra.mxu0 0.0
    %123 = vmatprep.subr.mxu0 0.0
    %124 = vmatpush1.msra.mxu0 0.0
    %125 = vmatprep.subr.mxu0 0.0
    %126 = vmatpush1.msra.mxu0 0.0
    %127 = vmatprep.subr.mxu0 0.0
    %128 = vmatpush1.msra.mxu0 0.0
    %129 = vmatprep.subr.mxu0 0.0
    %130 = vmatpush1.msra.mxu0 0.0
    %131 = vmatprep.subr.mxu0 0.0
    %132 = vmatpush1.msra.mxu0 0.0
    %133 = vmatprep.subr.mxu0 0.0
    %134 = vmatpush1.msra.mxu0 0.0
    %135 = vmatprep.subr.mxu0 0.0
    %136 = vmatpush1.msra.mxu0 0.0
    %137 = vmatprep.subr.mxu0 0.0
    %138 = vmatpush1.msra.mxu0 0.0
    %139 = vmatprep.subr.mxu0 0.0
    %140 = vmatpush1.msra.mxu0 0.0
    %141 = vmatprep.subr.mxu0 0.0
    %142 = vmatpush1.msra.mxu0 0.0
    %143 = vmatprep.subr.mxu0 0.0
    %144 = vmatpush1.msra.mxu0 0.0
    %145 = vmatprep.subr.mxu0 0.0
    %146 = vmatpush1.msra.mxu0 0.0
    %147 = vmatprep.subr.mxu0 0.0
    %148 = vmatpush1.msra.mxu0 0.0
    %149 = vmatprep.subr.mxu0 0.0
    %150 = vmatpush1.msra.mxu0 0.0
    %151 = vmatprep.subr.mxu0 0.0
    %152 = vmatpush1.msra.mxu0 0.0
    %153 = vmatprep.mubr.f32.mxu0 0.0
    %154 = vmatmul.mubr.f32.gmra.mrb[0].mxu0 %v84
    %v155 = vpop.f32.mrb[0].mxu0
    %v156 = vadd.f32 %v80, %v155
    %v157 = vpop.f32.mrb[0].mxu0
    %158 = vmatprep.mubr.f32.mxu0 0.0
    %159 = vmatmul.mubr.f32.gmra.mrb[0].mxu0 %v87
    %v160 = vpop.f32.mrb[0].mxu0
    %v161 = vadd.f32 %v80, %v160
    %v162 = vpop.f32.mrb[0].mxu0
    %163 = vdwg.mxu0
    %vm164 = vcmask 130048
    %v165 = vsel %vm164, %v156, -inf
    %166 = vmax.xlane.f32.xlu0 %v165
    %v167 = vpop.xlane.xlu0 %166
    %v168 = vsel %vm164, %v161, -inf
    %169 = vmax.xlane.f32.xlu0 %v168
    %v170 = vpop.xlane.xlu0 %169
    %v171 = vsub.f32 %v156, %v167
    %v172 = vsub.f32 %v161, %v170
    %v173 = vmul.f32 %v171, 1.442695
    %v174 = vpow.pop %v173
    %v175 = vmul.f32 %v172, 1.442695
    %v176 = vpow.pop %v175
    %v177 = vsel %vm164, %v174, 0.0
    %178 = vadd.xlane.f32.xlu0 %v177
    %v179 = vpop.xlane.xlu0 %178
    %v180 = vsel %vm164, %v176, 0.0
    %181 = vadd.xlane.f32.xlu0 %v180
    %v182 = vpop.xlane.xlu0 %181
    %v183 = vlog2.pop %v179
    %v184 = vmul.f32 %v183, 0.6931472
    %v185 = vlog2.pop %v182
    %v186 = vmul.f32 %v185, 0.6931472
    %v187 = vld [vmem:[%s59] sm:$0xff]
    %v188 = vld [vmem:[%s59 + $0x8] sm:$0xff]
    %v189 = vlaneseq
    %v190 = vand.u32 %v189, 127
    %191 = vset.pattern.permute.xlu0 0
    %192 = vperm.xlu0 %191, %v187
    %v193 = vpop.permute.xlu0 %192
    %194 = vset.pattern.permute.xlu0 0
    %195 = vperm.xlu0 %194, %v188
    %v196 = vpop.permute.xlu0 %195
    %vm197 = vcmp.eq.s32.totalorder %v190, %v193
    %vm198 = vcmp.eq.s32.totalorder %v190, %v196
    %v199 = vsel %vm197, %v171, 0.0
    %v200 = vsel %vm198, %v172, 0.0
    %v201 = vsel %vm164, %v199, 0.0
    %202 = vadd.xlane.f32.xlu0 %v201
    %v203 = vpop.xlane.xlu0 %202
    %v204 = vsel %vm164, %v200, 0.0
    %205 = vadd.xlane.f32.xlu0 %v204
    %v206 = vpop.xlane.xlu0 %205
    %vm207 = vcmp.ge.s32.totalorder %v187, 0
    %vm208 = vcmp.ge.s32.totalorder %v188, 0
    %v209 = vsel %vm207, 1, 0
    %v210 = vsel %vm208, 1, 0
    %v211 = vcvt.s32.f32 %v209
    %v212 = vcvt.s32.f32 %v210
    %v213 = vld [vmem:[#allocation2] sm:$0xff]
    %v214 = vld [vmem:[#allocation2 + $0x8] sm:$0xff]
    %v215 = vsub.f32 %v184, %v203
    %v216 = vsub.f32 %v186, %v206
    %v217 = vmul.f32 %v211, %v215
    %v218 = vmul.f32 %v212, %v216
    %v219 = vadd.f32 %v213, %v217
    %v220 = vadd.f32 %v214, %v218
    %vm221 = vcmask 7168
    %222 = vst.msk [vmem:[#allocation2] sm:$0xff] %vm221, %v219
    %223 = vst.msk [vmem:[#allocation2 + $0x8] sm:$0xff] %vm221, %v220
    // Predicated region
    $region22: #{tpu_custom_call.1} parent=1 // pred_check
      %p224 = pneg %p62
    $region23: #{tpu_custom_call.1} parent=1 // pred_check_branch
      %226 = sbr.rel (%p224) target = $region25
    $region24: #{tpu_custom_call.1} parent=1 // pred_region
      %v227 = vld [vmem:[#allocation2] sm:$0xff]
      %v228 = vld [vmem:[#allocation2 + $0x8] sm:$0xff]
      %v229 = vsel %vm221, %v227, 0.0
      %v230 = vsel %vm221, %v228, 0.0
      %v231 = vadd.f32 %v229, %v230
      %232 = vadd.xlane.f32.xlu0 %v231
      %v233 = vpop.xlane.xlu0 %232
      %v234 = vrot.slane %v233, 4
      %v235 = vadd.f32 %v233, %v234
      %v236 = vrot.slane %v235, 2
      %v237 = vadd.f32 %v235, %v236
      %v238 = vrot.slane %v237, 1
      %v239 = vadd.f32 %v237, %v238
      %s240 = vtos %v239
      %v241 = vstv %s240
      %v242 = vadd.f32 %v241, 0.0
      %243 = vst [vmem:[#allocation3] sm:$0x1] %v242
    $region25: #{tpu_custom_call.1} parent=1 // pred_fallthru
      _
    // Predicated region
    $region26: #{tpu_custom_call.1} parent=1 // pred_check
      _
    $region27: #{tpu_custom_call.1} parent=1 // pred_check_branch
      %245 = sbr.rel (0) target = $region29
    $region28: #{tpu_custom_call.1} parent=1 // pred_region
      %s247 = ssub.s32 16, 16
      %248 = vsyncadd [#allocation4], %s247
      %s250 = sshll.u32 [#allocation3], 4
      %s251 = int_to_ptr.vmem [resolvable:$true] %s250
      %253 = dma.vmem_to_hbm [thread:$0]  %s251, 16, %s4, [#allocation4]
    $region29: #{tpu_custom_call.1} parent=1 // pred_fallthru
      _
    // Predicated region
    $region30: #{tpu_custom_call.1} parent=1 // pred_check
      _
    $region31: #{tpu_custom_call.1} parent=1 // pred_check_branch
      %255 = sbr.rel (0) target = $region33
    $region32: #{tpu_custom_call.1} parent=1 // pred_region
      %256 = dma.done [#allocation4], 16
    $region33: #{tpu_custom_call.1} parent=1 // pred_fallthru
      _
    %257 = vsyncpa [#allocation4], 1

</llo_original>
